<compile_context>
chip_gen: v7x
topology: tpu7x:2x2x1
jax: 0.10.0
libtpu: 0.0.40
codegen_flags: <defaults>
</compile_context>

<pallas_src>
import functools

import jax
import jax.numpy as jnp
from jax import lax
from jax.experimental import pallas as pl
from jax.experimental.pallas import tpu as pltpu

K1, K2, K3 = 3, 5, 7  # temporal kernel sizes of the three conv branches


def temporal_inception_kernel(wpos_ref, w1_ref, w2_ref, w3_ref, w4_ref,
                              x_ref, o_ref, *, width):
  """One grid step = one batch element: x block (1, C, L), L = H*W."""
  x = x_ref[0].astype(jnp.float32)          # (C, L) f32 working copy
  L = x.shape[1]
  wpos = wpos_ref[...]                      # (1, L) int32: temporal index (i % W)

  # One lane-roll per temporal offset d (XLU), shared by every branch.
  # rolled[d][c, i] == x[c, i + d] (mod L); out-of-range temporal positions,
  # including any cross-row wrap from the flattened axis, are exactly the
  # positions the boundary masks below overwrite.
  max_d = K3 // 2
  rolled = {}
  for d in range(1, max_d + 1):
    rolled[+d] = pltpu.roll(x, (-d) % L, axis=1)   # out[i] = x[i + d]
    rolled[-d] = pltpu.roll(x, d, axis=1)          # out[i] = x[i - d]

  def shifted(d, fill):
    cond = (wpos >= width - d) if d > 0 else (wpos < -d)
    return jnp.where(cond, fill, rolled[d])

  # Zero-filled shifts ('same' conv padding), reused by all three conv branches.
  zsh = {d: shifted(d, jnp.float32(0.0))
         for d in range(-max_d, max_d + 1) if d != 0}

  def dw_conv(w_ref, K):
    # Depthwise cross-correlation: y[c, w] = sum_k w[c, k] * x[c, w + k - pad].
    w = w_ref[...]                          # (C, K) in VMEM
    pad = K // 2
    acc = w[:, pad:pad + 1] * x             # center tap (d = 0)
    for k in range(K):
      d = k - pad
      if d != 0:
        acc = acc + w[:, k:k + 1] * zsh[d]  # (C,1)*(C,L) lane broadcast, VPU FMA
    return acc

  o_ref[0, 0] = dw_conv(w1_ref, K1).astype(o_ref.dtype)
  o_ref[0, 1] = dw_conv(w2_ref, K2).astype(o_ref.dtype)
  o_ref[0, 2] = dw_conv(w3_ref, K3).astype(o_ref.dtype)

  # MaxPool2d((1,3), stride=1, padding=(0,1)): out-of-range neighbors are -inf
  # (never win); then the grouped 1x1 conv is a per-channel scalar scale.
  neg_inf = jnp.float32(-jnp.inf)
  pooled = jnp.maximum(jnp.maximum(shifted(-1, neg_inf), x), shifted(+1, neg_inf))
  o_ref[0, 3] = (w4_ref[...] * pooled).astype(o_ref.dtype)


def temporal_inception(x, w1, w2, w3, w4):
  N, C, H, W = x.shape
  L = H * W
  x2 = x.reshape(N, C, L)                   # merge adjacent dims: free reshape
  # Per-lane temporal position (i % W), precomputed once outside the kernel so
  # no grid-invariant iota/mod work is redone per step.
  wpos = jnp.broadcast_to(jnp.arange(W, dtype=jnp.int32), (H, W)).reshape(1, L)

  kernel = functools.partial(temporal_inception_kernel, width=W)
  full = lambda n: (0, 0)                   # grid-invariant (weights, wpos)

  out = pl.pallas_call(
      kernel,
      grid=(N,),
      in_specs=[
          pl.BlockSpec((1, L), full),
          pl.BlockSpec((C, w1.shape[1]), full),
          pl.BlockSpec((C, w2.shape[1]), full),
          pl.BlockSpec((C, w3.shape[1]), full),
          pl.BlockSpec((C, w4.shape[1]), full),
          pl.BlockSpec((1, C, L), lambda n: (n, 0, 0)),
      ],
      out_specs=pl.BlockSpec((1, 4, C, L), lambda n: (n, 0, 0, 0)),
      out_shape=jax.ShapeDtypeStruct((N, 4, C, L), x.dtype),
      compiler_params=pltpu.CompilerParams(dimension_semantics=("parallel",)),
  )(wpos, w1, w2, w3, w4, x2)

  # (N, 4, C, L) -> (N, 4*C, H, W): pure metadata reshape; exactly matches
  # torch.cat((p1, p2, p3, p4), dim=1) channel ordering.
  return out.reshape(N, 4 * C, H, W)


def renorm(w, max_norm=1.0):
  # Conv2dWithConstraint: torch.renorm(weight, p=2, dim=0, maxnorm=max_norm)
  # (clamp the L2 norm of each output-channel filter to max_norm).
  axes = tuple(range(1, w.ndim))
  norms = jnp.sqrt(jnp.sum(w * w, axis=axes, keepdims=True))
  scale = jnp.where(norms > max_norm, max_norm / norms, 1.0)
  return w * scale


def reference(x, w1, w2, w3, w4):
  # Pure-JAX reference (depthwise conv + max-pool) for correctness checking.
  C = x.shape[1]

  def dwconv(x, w):
    K = w.shape[-1]
    wk = w.reshape(C, 1, 1, K)
    return lax.conv_general_dilated(
        x, wk, window_strides=(1, 1),
        padding=((0, 0), (K // 2, K // 2)),
        dimension_numbers=("NCHW", "OIHW", "NCHW"),
        feature_group_count=C)

  p1 = dwconv(x, w1)
  p2 = dwconv(x, w2)
  p3 = dwconv(x, w3)
  pooled = lax.reduce_window(x, -jnp.inf, lax.max,
                             (1, 1, 1, 3), (1, 1, 1, 1),
                             ((0, 0), (0, 0), (0, 0), (1, 1)))
  p4 = pooled * w4.reshape(1, C, 1, 1)
  return jnp.concatenate([p1, p2, p3, p4], axis=1)


if __name__ == "__main__":
  # groups=out_chan requires in_chan divisible by out_chan; use in_chan=out_chan=4
  # (the default in_chan=1 with groups=4 is not constructible in PyTorch either).
  N, C, H, W = 2, 4, 16, 16

  key = jax.random.PRNGKey(0)
  kx, k1, k2, k3, k4 = jax.random.split(key, 5)
  x = jax.random.normal(kx, (N, C, H, W), dtype=jnp.float32)
  w1 = renorm(0.5 * jax.random.normal(k1, (C, K1), dtype=jnp.float32))
  w2 = renorm(0.5 * jax.random.normal(k2, (C, K2), dtype=jnp.float32))
  w3 = renorm(0.5 * jax.random.normal(k3, (C, K3), dtype=jnp.float32))
  w4 = renorm(0.5 * jax.random.normal(k4, (C, 1), dtype=jnp.float32))

  out = jax.jit(temporal_inception)(x, w1, w2, w3, w4)
  out = jax.block_until_ready(out)

  ref = reference(x, w1, w2, w3, w4)
  assert out.shape == (N, 4 * C, H, W), out.shape
  assert out.dtype == jnp.float32
  assert jnp.allclose(out, ref, atol=1e-5, rtol=1e-5), "mismatch vs reference"

  print("KERNEL_OK")
</pallas_src>

<mosaic_0001>
module attributes {stable_mosaic.version = 11 : i64} {
  func.func @temporal_inception_kernel(%arg0: i32, %arg1: memref<1x256xi32, #tpu.memory_space<vmem>>, %arg2: memref<4x3xf32, #tpu.memory_space<vmem>>, %arg3: memref<4x5xf32, #tpu.memory_space<vmem>>, %arg4: memref<4x7xf32, #tpu.memory_space<vmem>>, %arg5: memref<4x1xf32, #tpu.memory_space<vmem>>, %arg6: memref<1x4x256xf32, #tpu.memory_space<vmem>>, %arg7: memref<1x4x4x256xf32, #tpu.memory_space<vmem>>) attributes {dimension_semantics = [#tpu.dimension_semantics<parallel>], iteration_bounds = array<i64: 2>, scalar_prefetch = 0 : i64, scratch_operands = 0 : i64, tpu.core_type = #tpu.core_type<tc>, window_params = [{pipeline_mode = #tpu.pipeline_mode<synchronous>, transform_indices = @transform_0, window_bounds = array<i64: 1, 256>}, {pipeline_mode = #tpu.pipeline_mode<synchronous>, transform_indices = @transform_1, window_bounds = array<i64: 4, 3>}, {pipeline_mode = #tpu.pipeline_mode<synchronous>, transform_indices = @transform_2, window_bounds = array<i64: 4, 5>}, {pipeline_mode = #tpu.pipeline_mode<synchronous>, transform_indices = @transform_3, window_bounds = array<i64: 4, 7>}, {pipeline_mode = #tpu.pipeline_mode<synchronous>, transform_indices = @transform_4, window_bounds = array<i64: 4, 1>}, {transform_indices = @transform_5, window_bounds = array<i64: 1, 4, 256>}, {transform_indices = @transform_6, window_bounds = array<i64: 1, 4, 4, 256>}]} {
    %c0 = arith.constant 0 : index
    %c0_0 = arith.constant 0 : index
    %c0_1 = arith.constant 0 : index
    %0 = vector.load %arg6[%c0, %c0_0, %c0_1] : memref<1x4x256xf32, #tpu.memory_space<vmem>>, vector<1x4x256xf32>
    %1 = vector.shape_cast %0 : vector<1x4x256xf32> to vector<4x256xf32>
    %c0_2 = arith.constant 0 : index
    %c0_3 = arith.constant 0 : index
    %2 = vector.load %arg1[%c0_2, %c0_3] : memref<1x256xi32, #tpu.memory_space<vmem>>, vector<1x256xi32>
    %c255_i32 = arith.constant 255 : i32
    %3 = tpu.dynamic_rotate %1 by %c255_i32 dim 1 : vector<4x256xf32>, i32 -> vector<4x256xf32>
    %c1_i32 = arith.constant 1 : i32
    %4 = tpu.dynamic_rotate %1 by %c1_i32 dim 1 : vector<4x256xf32>, i32 -> vector<4x256xf32>
    %c254_i32 = arith.constant 254 : i32
    %5 = tpu.dynamic_rotate %1 by %c254_i32 dim 1 : vector<4x256xf32>, i32 -> vector<4x256xf32>
    %c2_i32 = arith.constant 2 : i32
    %6 = tpu.dynamic_rotate %1 by %c2_i32 dim 1 : vector<4x256xf32>, i32 -> vector<4x256xf32>
    %c253_i32 = arith.constant 253 : i32
    %7 = tpu.dynamic_rotate %1 by %c253_i32 dim 1 : vector<4x256xf32>, i32 -> vector<4x256xf32>
    %c3_i32 = arith.constant 3 : i32
    %8 = tpu.dynamic_rotate %1 by %c3_i32 dim 1 : vector<4x256xf32>, i32 -> vector<4x256xf32>
    %c3_i32_4 = arith.constant 3 : i32
    %9 = vector.broadcast %c3_i32_4 : i32 to vector<1x256xi32>
    %10 = arith.cmpi slt, %2, %9 : vector<1x256xi32>
    %cst = arith.constant 0.000000e+00 : f32
    %11 = vector.shape_cast %10 : vector<1x256xi1> to vector<1x256xi1>
    %12 = vector.broadcast %11 : vector<1x256xi1> to vector<4x256xi1>
    %13 = vector.broadcast %cst : f32 to vector<4x256xf32>
    %14 = arith.select %12, %13, %8 : vector<4x256xi1>, vector<4x256xf32>
    %c2_i32_5 = arith.constant 2 : i32
    %15 = vector.broadcast %c2_i32_5 : i32 to vector<1x256xi32>
    %16 = arith.cmpi slt, %2, %15 : vector<1x256xi32>
    %cst_6 = arith.constant 0.000000e+00 : f32
    %17 = vector.shape_cast %16 : vector<1x256xi1> to vector<1x256xi1>
    %18 = vector.broadcast %17 : vector<1x256xi1> to vector<4x256xi1>
    %19 = vector.broadcast %cst_6 : f32 to vector<4x256xf32>
    %20 = arith.select %18, %19, %6 : vector<4x256xi1>, vector<4x256xf32>
    %c1_i32_7 = arith.constant 1 : i32
    %21 = vector.broadcast %c1_i32_7 : i32 to vector<1x256xi32>
    %22 = arith.cmpi slt, %2, %21 : vector<1x256xi32>
    %cst_8 = arith.constant 0.000000e+00 : f32
    %23 = vector.shape_cast %22 : vector<1x256xi1> to vector<1x256xi1>
    %24 = vector.broadcast %23 : vector<1x256xi1> to vector<4x256xi1>
    %25 = vector.broadcast %cst_8 : f32 to vector<4x256xf32>
    %26 = arith.select %24, %25, %4 : vector<4x256xi1>, vector<4x256xf32>
    %c15_i32 = arith.constant 15 : i32
    %27 = vector.broadcast %c15_i32 : i32 to vector<1x256xi32>
    %28 = arith.cmpi sge, %2, %27 : vector<1x256xi32>
    %cst_9 = arith.constant 0.000000e+00 : f32
    %29 = vector.shape_cast %28 : vector<1x256xi1> to vector<1x256xi1>
    %30 = vector.broadcast %29 : vector<1x256xi1> to vector<4x256xi1>
    %31 = vector.broadcast %cst_9 : f32 to vector<4x256xf32>
    %32 = arith.select %30, %31, %3 : vector<4x256xi1>, vector<4x256xf32>
    %c14_i32 = arith.constant 14 : i32
    %33 = vector.broadcast %c14_i32 : i32 to vector<1x256xi32>
    %34 = arith.cmpi sge, %2, %33 : vector<1x256xi32>
    %cst_10 = arith.constant 0.000000e+00 : f32
    %35 = vector.shape_cast %34 : vector<1x256xi1> to vector<1x256xi1>
    %36 = vector.broadcast %35 : vector<1x256xi1> to vector<4x256xi1>
    %37 = vector.broadcast %cst_10 : f32 to vector<4x256xf32>
    %38 = arith.select %36, %37, %5 : vector<4x256xi1>, vector<4x256xf32>
    %c13_i32 = arith.constant 13 : i32
    %39 = vector.broadcast %c13_i32 : i32 to vector<1x256xi32>
    %40 = arith.cmpi sge, %2, %39 : vector<1x256xi32>
    %cst_11 = arith.constant 0.000000e+00 : f32
    %41 = vector.shape_cast %40 : vector<1x256xi1> to vector<1x256xi1>
    %42 = vector.broadcast %41 : vector<1x256xi1> to vector<4x256xi1>
    %43 = vector.broadcast %cst_11 : f32 to vector<4x256xf32>
    %44 = arith.select %42, %43, %7 : vector<4x256xi1>, vector<4x256xf32>
    %c0_12 = arith.constant 0 : index
    %c0_13 = arith.constant 0 : index
    %45 = vector.load %arg2[%c0_12, %c0_13] : memref<4x3xf32, #tpu.memory_space<vmem>>, vector<4x3xf32>
    %46 = vector.extract_strided_slice %45 {offsets = [0, 1], sizes = [4, 1], strides = [1, 1]} : vector<4x3xf32> to vector<4x1xf32>
    %47 = vector.broadcast %46 : vector<4x1xf32> to vector<4x256xf32>
    %48 = arith.mulf %47, %1 : vector<4x256xf32>
    %49 = vector.extract_strided_slice %45 {offsets = [0, 0], sizes = [4, 1], strides = [1, 1]} : vector<4x3xf32> to vector<4x1xf32>
    %50 = vector.broadcast %49 : vector<4x1xf32> to vector<4x256xf32>
    %51 = arith.mulf %50, %26 : vector<4x256xf32>
    %52 = arith.addf %48, %51 : vector<4x256xf32>
    %53 = vector.extract_strided_slice %45 {offsets = [0, 2], sizes = [4, 1], strides = [1, 1]} : vector<4x3xf32> to vector<4x1xf32>
    %54 = vector.broadcast %53 : vector<4x1xf32> to vector<4x256xf32>
    %55 = arith.mulf %54, %32 : vector<4x256xf32>
    %56 = arith.addf %52, %55 : vector<4x256xf32>
    %c0_14 = arith.constant 0 : index
    %c0_15 = arith.constant 0 : index
    %c0_16 = arith.constant 0 : index
    %c0_17 = arith.constant 0 : index
    %57 = vector.load %arg7[%c0_14, %c0_15, %c0_16, %c0_17] : memref<1x4x4x256xf32, #tpu.memory_space<vmem>>, vector<1x1x4x256xf32>
    %58 = vector.shape_cast %57 : vector<1x1x4x256xf32> to vector<4x256xf32>
    %59 = vector.shape_cast %56 : vector<4x256xf32> to vector<1x1x4x256xf32>
    tpu.vector_store %arg7[%c0_14, %c0_15, %c0_16, %c0_17], %59 {strides = array<i32>} : memref<1x4x4x256xf32, #tpu.memory_space<vmem>>, vector<1x1x4x256xf32>,
    %c0_18 = arith.constant 0 : index
    %c0_19 = arith.constant 0 : index
    %60 = vector.load %arg3[%c0_18, %c0_19] : memref<4x5xf32, #tpu.memory_space<vmem>>, vector<4x5xf32>
    %61 = vector.extract_strided_slice %60 {offsets = [0, 2], sizes = [4, 1], strides = [1, 1]} : vector<4x5xf32> to vector<4x1xf32>
    %62 = vector.broadcast %61 : vector<4x1xf32> to vector<4x256xf32>
    %63 = arith.mulf %62, %1 : vector<4x256xf32>
    %64 = vector.extract_strided_slice %60 {offsets = [0, 0], sizes = [4, 1], strides = [1, 1]} : vector<4x5xf32> to vector<4x1xf32>
    %65 = vector.broadcast %64 : vector<4x1xf32> to vector<4x256xf32>
    %66 = arith.mulf %65, %20 : vector<4x256xf32>
    %67 = arith.addf %63, %66 : vector<4x256xf32>
    %68 = vector.extract_strided_slice %60 {offsets = [0, 1], sizes = [4, 1], strides = [1, 1]} : vector<4x5xf32> to vector<4x1xf32>
    %69 = vector.broadcast %68 : vector<4x1xf32> to vector<4x256xf32>
    %70 = arith.mulf %69, %26 : vector<4x256xf32>
    %71 = arith.addf %67, %70 : vector<4x256xf32>
    %72 = vector.extract_strided_slice %60 {offsets = [0, 3], sizes = [4, 1], strides = [1, 1]} : vector<4x5xf32> to vector<4x1xf32>
    %73 = vector.broadcast %72 : vector<4x1xf32> to vector<4x256xf32>
    %74 = arith.mulf %73, %32 : vector<4x256xf32>
    %75 = arith.addf %71, %74 : vector<4x256xf32>
    %76 = vector.extract_strided_slice %60 {offsets = [0, 4], sizes = [4, 1], strides = [1, 1]} : vector<4x5xf32> to vector<4x1xf32>
    %77 = vector.broadcast %76 : vector<4x1xf32> to vector<4x256xf32>
    %78 = arith.mulf %77, %38 : vector<4x256xf32>
    %79 = arith.addf %75, %78 : vector<4x256xf32>
    %c0_20 = arith.constant 0 : index
    %c1 = arith.constant 1 : index
    %c0_21 = arith.constant 0 : index
    %c0_22 = arith.constant 0 : index
    %80 = vector.load %arg7[%c0_20, %c1, %c0_21, %c0_22] : memref<1x4x4x256xf32, #tpu.memory_space<vmem>>, vector<1x1x4x256xf32>
    %81 = vector.shape_cast %80 : vector<1x1x4x256xf32> to vector<4x256xf32>
    %82 = vector.shape_cast %79 : vector<4x256xf32> to vector<1x1x4x256xf32>
    tpu.vector_store %arg7[%c0_20, %c1, %c0_21, %c0_22], %82 {strides = array<i32>} : memref<1x4x4x256xf32, #tpu.memory_space<vmem>>, vector<1x1x4x256xf32>,
    %c0_23 = arith.constant 0 : index
    %c0_24 = arith.constant 0 : index
    %83 = vector.load %arg4[%c0_23, %c0_24] : memref<4x7xf32, #tpu.memory_space<vmem>>, vector<4x7xf32>
    %84 = vector.extract_strided_slice %83 {offsets = [0, 3], sizes = [4, 1], strides = [1, 1]} : vector<4x7xf32> to vector<4x1xf32>
    %85 = vector.broadcast %84 : vector<4x1xf32> to vector<4x256xf32>
    %86 = arith.mulf %85, %1 : vector<4x256xf32>
    %87 = vector.extract_strided_slice %83 {offsets = [0, 0], sizes = [4, 1], strides = [1, 1]} : vector<4x7xf32> to vector<4x1xf32>
    %88 = vector.broadcast %87 : vector<4x1xf32> to vector<4x256xf32>
    %89 = arith.mulf %88, %14 : vector<4x256xf32>
    %90 = arith.addf %86, %89 : vector<4x256xf32>
    %91 = vector.extract_strided_slice %83 {offsets = [0, 1], sizes = [4, 1], strides = [1, 1]} : vector<4x7xf32> to vector<4x1xf32>
    %92 = vector.broadcast %91 : vector<4x1xf32> to vector<4x256xf32>
    %93 = arith.mulf %92, %20 : vector<4x256xf32>
    %94 = arith.addf %90, %93 : vector<4x256xf32>
    %95 = vector.extract_strided_slice %83 {offsets = [0, 2], sizes = [4, 1], strides = [1, 1]} : vector<4x7xf32> to vector<4x1xf32>
    %96 = vector.broadcast %95 : vector<4x1xf32> to vector<4x256xf32>
    %97 = arith.mulf %96, %26 : vector<4x256xf32>
    %98 = arith.addf %94, %97 : vector<4x256xf32>
    %99 = vector.extract_strided_slice %83 {offsets = [0, 4], sizes = [4, 1], strides = [1, 1]} : vector<4x7xf32> to vector<4x1xf32>
    %100 = vector.broadcast %99 : vector<4x1xf32> to vector<4x256xf32>
    %101 = arith.mulf %100, %32 : vector<4x256xf32>
    %102 = arith.addf %98, %101 : vector<4x256xf32>
    %103 = vector.extract_strided_slice %83 {offsets = [0, 5], sizes = [4, 1], strides = [1, 1]} : vector<4x7xf32> to vector<4x1xf32>
    %104 = vector.broadcast %103 : vector<4x1xf32> to vector<4x256xf32>
    %105 = arith.mulf %104, %38 : vector<4x256xf32>
    %106 = arith.addf %102, %105 : vector<4x256xf32>
    %107 = vector.extract_strided_slice %83 {offsets = [0, 6], sizes = [4, 1], strides = [1, 1]} : vector<4x7xf32> to vector<4x1xf32>
    %108 = vector.broadcast %107 : vector<4x1xf32> to vector<4x256xf32>
    %109 = arith.mulf %108, %44 : vector<4x256xf32>
    %110 = arith.addf %106, %109 : vector<4x256xf32>
    %c0_25 = arith.constant 0 : index
    %c2 = arith.constant 2 : index
    %c0_26 = arith.constant 0 : index
    %c0_27 = arith.constant 0 : index
    %111 = vector.load %arg7[%c0_25, %c2, %c0_26, %c0_27] : memref<1x4x4x256xf32, #tpu.memory_space<vmem>>, vector<1x1x4x256xf32>
    %112 = vector.shape_cast %111 : vector<1x1x4x256xf32> to vector<4x256xf32>
    %113 = vector.shape_cast %110 : vector<4x256xf32> to vector<1x1x4x256xf32>
    tpu.vector_store %arg7[%c0_25, %c2, %c0_26, %c0_27], %113 {strides = array<i32>} : memref<1x4x4x256xf32, #tpu.memory_space<vmem>>, vector<1x1x4x256xf32>,
    %c1_i32_28 = arith.constant 1 : i32
    %114 = vector.broadcast %c1_i32_28 : i32 to vector<1x256xi32>
    %115 = arith.cmpi slt, %2, %114 : vector<1x256xi32>
    %cst_29 = arith.constant 0xFF800000 : f32
    %116 = vector.shape_cast %115 : vector<1x256xi1> to vector<1x256xi1>
    %117 = vector.broadcast %116 : vector<1x256xi1> to vector<4x256xi1>
    %118 = vector.broadcast %cst_29 : f32 to vector<4x256xf32>
    %119 = arith.select %117, %118, %4 : vector<4x256xi1>, vector<4x256xf32>
    %120 = arith.maximumf %119, %1 : vector<4x256xf32>
    %c15_i32_30 = arith.constant 15 : i32
    %121 = vector.broadcast %c15_i32_30 : i32 to vector<1x256xi32>
    %122 = arith.cmpi sge, %2, %121 : vector<1x256xi32>
    %cst_31 = arith.constant 0xFF800000 : f32
    %123 = vector.shape_cast %122 : vector<1x256xi1> to vector<1x256xi1>
    %124 = vector.broadcast %123 : vector<1x256xi1> to vector<4x256xi1>
    %125 = vector.broadcast %cst_31 : f32 to vector<4x256xf32>
    %126 = arith.select %124, %125, %3 : vector<4x256xi1>, vector<4x256xf32>
    %127 = arith.maximumf %120, %126 : vector<4x256xf32>
    %c0_32 = arith.constant 0 : index
    %c0_33 = arith.constant 0 : index
    %128 = vector.load %arg5[%c0_32, %c0_33] : memref<4x1xf32, #tpu.memory_space<vmem>>, vector<4x1xf32>
    %129 = vector.broadcast %128 : vector<4x1xf32> to vector<4x256xf32>
    %130 = arith.mulf %129, %127 : vector<4x256xf32>
    %c0_34 = arith.constant 0 : index
    %c3 = arith.constant 3 : index
    %c0_35 = arith.constant 0 : index
    %c0_36 = arith.constant 0 : index
    %131 = vector.load %arg7[%c0_34, %c3, %c0_35, %c0_36] : memref<1x4x4x256xf32, #tpu.memory_space<vmem>>, vector<1x1x4x256xf32>
    %132 = vector.shape_cast %131 : vector<1x1x4x256xf32> to vector<4x256xf32>
    %133 = vector.shape_cast %130 : vector<4x256xf32> to vector<1x1x4x256xf32>
    tpu.vector_store %arg7[%c0_34, %c3, %c0_35, %c0_36], %133 {strides = array<i32>} : memref<1x4x4x256xf32, #tpu.memory_space<vmem>>, vector<1x1x4x256xf32>,
    return
  }
  func.func @transform_0(%arg0: i32) -> (i32, i32) {
    %c0_i32 = arith.constant 0 : i32
    %c0_i32_0 = arith.constant 0 : i32
    %c0_i32_1 = arith.constant 0 : i32
    return %c0_i32, %c0_i32_0 : i32, i32
  }
  func.func @transform_1(%arg0: i32) -> (i32, i32) {
    %c0_i32 = arith.constant 0 : i32
    %c0_i32_0 = arith.constant 0 : i32
    %c0_i32_1 = arith.constant 0 : i32
    return %c0_i32, %c0_i32_0 : i32, i32
  }
  func.func @transform_2(%arg0: i32) -> (i32, i32) {
    %c0_i32 = arith.constant 0 : i32
    %c0_i32_0 = arith.constant 0 : i32
    %c0_i32_1 = arith.constant 0 : i32
    return %c0_i32, %c0_i32_0 : i32, i32
  }
  func.func @transform_3(%arg0: i32) -> (i32, i32) {
    %c0_i32 = arith.constant 0 : i32
    %c0_i32_0 = arith.constant 0 : i32
    %c0_i32_1 = arith.constant 0 : i32
    return %c0_i32, %c0_i32_0 : i32, i32
  }
  func.func @transform_4(%arg0: i32) -> (i32, i32) {
    %c0_i32 = arith.constant 0 : i32
    %c0_i32_0 = arith.constant 0 : i32
    %c0_i32_1 = arith.constant 0 : i32
    return %c0_i32, %c0_i32_0 : i32, i32
  }
  func.func @transform_5(%arg0: i32) -> (i32, i32, i32) {
    %c0_i32 = arith.constant 0 : i32
    %c0_i32_0 = arith.constant 0 : i32
    %c0_i32_1 = arith.constant 0 : i32
    return %arg0, %c0_i32, %c0_i32_0 : i32, i32, i32
  }
  func.func @transform_6(%arg0: i32) -> (i32, i32, i32, i32) {
    %c0_i32 = arith.constant 0 : i32
    %c0_i32_0 = arith.constant 0 : i32
    %c0_i32_1 = arith.constant 0 : i32
    %c0_i32_2 = arith.constant 0 : i32
    return %arg0, %c0_i32, %c0_i32_0, %c0_i32_1 : i32, i32, i32, i32
  }
}

</mosaic_0001>

<llo_original>
// kernel: temporal_inception.1
$region0: #{temporal_inception.1}
  #allocation0 [shape = 'u32[]', space=smem, size = 0x4, offset = 0x4, fixed_abs, tag = 'smem constant byte address 0x4 - core index']
  #allocation1 [shape = 'u32[144,128]{1,0:T(1,128)}', space=vmem, size = 0x12000, scoped, tag = 'internal scratch']
  %s0 = inlined_call_operand.vmem [shape: s32[1,256], index: 0, kind: input, shape index: {}]
  %s1 = inlined_call_operand.vmem [shape: f32[4,3], index: 1, kind: input, shape index: {}]
  %s2 = inlined_call_operand.vmem [shape: f32[4,5], index: 2, kind: input, shape index: {}]
  %s3 = inlined_call_operand.vmem [shape: f32[4,7], index: 3, kind: input, shape index: {}]
  %s4 = inlined_call_operand.vmem [shape: f32[4,1], index: 4, kind: input, shape index: {}]
  %s5 = inlined_call_operand.vmem [shape: f32[2,4,256], index: 5, kind: input, shape index: {}]
  %s6 = inlined_call_operand.vmem [shape: f32[2,4,4,256], index: 6, kind: output, shape index: {}]
  %s7 = sld [smem:[#allocation0]]
  $region57: #{temporal_inception.1} parent=0
    _
  %s9 = ssub.s32 1, %s7
  %s10 = scalar_select 0, %s9, %s7
  loop: start=0, step=1, limit=4
  $region2: #{temporal_inception.1} parent=0 // loop_pre_header
    _
  $region3: #{temporal_inception.1} parent=0 // loop_header
    %s12 = sphi 0, %s16
    %p13 = scmp.ge.s32.totalorder %s12, 4
    %s20 = sphi 0, %s20
    %s22 = sphi 0, %s20
    %s23 = sphi 0, %s22
    %s37 = sphi 0, %s23
    %s41 = sphi 0, %s41
    %s43 = sphi 0, %s41
    %s44 = sphi 0, %s43
    %s58 = sphi 0, %s44
    %s62 = sphi 0, %s62
    %s64 = sphi 0, %s62
    %s65 = sphi 0, %s64
    %s79 = sphi 0, %s65
    %s83 = sphi 0, %s83
    %s85 = sphi 0, %s83
    %s86 = sphi 0, %s85
    %s100 = sphi 0, %s86
    %s104 = sphi 0, %s104
    %s106 = sphi 0, %s104
    %s107 = sphi 0, %s106
    %s121 = sphi 0, %s107
    %s127 = sphi 0, %s129
    %s130 = sphi 0, %s127
    %s131 = sphi 0, %s130
    %s147 = sphi 0, %s131
    %s153 = sphi 0, %s155
    %s156 = sphi 0, %s153
    %s157 = sphi 0, %s156
    %s173 = sphi 0, %s157
  $region4: #{temporal_inception.1} parent=0 // loop_header_branch
    %15 = sbr.rel (%p13) target = $region8
  $region5: #{temporal_inception.1} parent=0 // loop_body
    %s17 = ssub.s32 %s12, 1
    %s18 = ssub.s32 %s12, 2
    %s19 = sadd.s32 %s12, 1
    %s21 = sadd.s32 %s20, 1
    %p24 = scmp.eq.s32.totalorder %s12, 1
    %p25 = scmp.ne.s32.totalorder %s20, %s22
    %p26 = scmp.eq.s32.totalorder %s12, 0
    %p27 = por %p25, %p26
    %p28 = scmp.ne.s32.totalorder %s20, %s22
    %p29 = scmp.eq.s32.totalorder %s17, 1
    %p30 = por %p28, %p29
    %p31 = scmp.ne.s32.totalorder %s22, %s23
    %p32 = scmp.eq.s32.totalorder %s17, 0
    %p33 = por %p31, %p32
    %p34 = scmp.ne.s32.totalorder %s22, %s23
    %p35 = scmp.eq.s32.totalorder %s18, 1
    %p36 = por %p34, %p35
    %p38 = scmp.ne.s32.totalorder %s23, %s37
    %p39 = scmp.eq.s32.totalorder %s18, 0
    %p40 = por %p38, %p39
    %s42 = sadd.s32 %s41, 1
    %p45 = scmp.eq.s32.totalorder %s12, 1
    %p46 = scmp.ne.s32.totalorder %s41, %s43
    %p47 = scmp.eq.s32.totalorder %s12, 0
    %p48 = por %p46, %p47
    %p49 = scmp.ne.s32.totalorder %s41, %s43
    %p50 = scmp.eq.s32.totalorder %s17, 1
    %p51 = por %p49, %p50
    %p52 = scmp.ne.s32.totalorder %s43, %s44
    %p53 = scmp.eq.s32.totalorder %s17, 0
    %p54 = por %p52, %p53
    %p55 = scmp.ne.s32.totalorder %s43, %s44
    %p56 = scmp.eq.s32.totalorder %s18, 1
    %p57 = por %p55, %p56
    %p59 = scmp.ne.s32.totalorder %s44, %s58
    %p60 = scmp.eq.s32.totalorder %s18, 0
    %p61 = por %p59, %p60
    %s63 = sadd.s32 %s62, 1
    %p66 = scmp.eq.s32.totalorder %s12, 1
    %p67 = scmp.ne.s32.totalorder %s62, %s64
    %p68 = scmp.eq.s32.totalorder %s12, 0
    %p69 = por %p67, %p68
    %p70 = scmp.ne.s32.totalorder %s62, %s64
    %p71 = scmp.eq.s32.totalorder %s17, 1
    %p72 = por %p70, %p71
    %p73 = scmp.ne.s32.totalorder %s64, %s65
    %p74 = scmp.eq.s32.totalorder %s17, 0
    %p75 = por %p73, %p74
    %p76 = scmp.ne.s32.totalorder %s64, %s65
    %p77 = scmp.eq.s32.totalorder %s18, 1
    %p78 = por %p76, %p77
    %p80 = scmp.ne.s32.totalorder %s65, %s79
    %p81 = scmp.eq.s32.totalorder %s18, 0
    %p82 = por %p80, %p81
    %s84 = sadd.s32 %s83, 1
    %p87 = scmp.eq.s32.totalorder %s12, 1
    %p88 = scmp.ne.s32.totalorder %s83, %s85
    %p89 = scmp.eq.s32.totalorder %s12, 0
    %p90 = por %p88, %p89
    %p91 = scmp.ne.s32.totalorder %s83, %s85
    %p92 = scmp.eq.s32.totalorder %s17, 1
    %p93 = por %p91, %p92
    %p94 = scmp.ne.s32.totalorder %s85, %s86
    %p95 = scmp.eq.s32.totalorder %s17, 0
    %p96 = por %p94, %p95
    %p97 = scmp.ne.s32.totalorder %s85, %s86
    %p98 = scmp.eq.s32.totalorder %s18, 1
    %p99 = por %p97, %p98
    %p101 = scmp.ne.s32.totalorder %s86, %s100
    %p102 = scmp.eq.s32.totalorder %s18, 0
    %p103 = por %p101, %p102
    %s105 = sadd.s32 %s104, 1
    %p108 = scmp.eq.s32.totalorder %s12, 1
    %p109 = scmp.ne.s32.totalorder %s104, %s106
    %p110 = scmp.eq.s32.totalorder %s12, 0
    %p111 = por %p109, %p110
    %p112 = scmp.ne.s32.totalorder %s104, %s106
    %p113 = scmp.eq.s32.totalorder %s17, 1
    %p114 = por %p112, %p113
    %p115 = scmp.ne.s32.totalorder %s106, %s107
    %p116 = scmp.eq.s32.totalorder %s17, 0
    %p117 = por %p115, %p116
    %p118 = scmp.ne.s32.totalorder %s106, %s107
    %p119 = scmp.eq.s32.totalorder %s18, 1
    %p120 = por %p118, %p119
    %p122 = scmp.ne.s32.totalorder %s107, %s121
    %p123 = scmp.eq.s32.totalorder %s18, 0
    %p124 = por %p122, %p123
    %s125 = ssub.s32 %s12, %s19
    %p126 = scmp.eq.s32.totalorder %s125, 0
    %s128 = sadd.s32 %s127, 1
    %s129 = scalar_select %p126, %s127, %s128
    %p132 = pneg %p126
    %p133 = scmp.eq.s32.totalorder %s12, 1
    %p134 = por %p132, %p133
    %p135 = scmp.ne.s32.totalorder %s127, %s130
    %p136 = scmp.eq.s32.totalorder %s12, 0
    %p137 = por %p135, %p136
    %p138 = scmp.ne.s32.totalorder %s127, %s130
    %p139 = scmp.eq.s32.totalorder %s17, 1
    %p140 = por %p138, %p139
    %p141 = scmp.ne.s32.totalorder %s130, %s131
    %p142 = scmp.eq.s32.totalorder %s17, 0
    %p143 = por %p141, %p142
    %p144 = scmp.ne.s32.totalorder %s130, %s131
    %p145 = scmp.eq.s32.totalorder %s18, 1
    %p146 = por %p144, %p145
    %p148 = scmp.ne.s32.totalorder %s131, %s147
    %p149 = scmp.eq.s32.totalorder %s18, 0
    %p150 = por %p148, %p149
    %s151 = ssub.s32 %s12, %s19
    %p152 = scmp.eq.s32.totalorder %s151, 0
    %s154 = sadd.s32 %s153, 1
    %s155 = scalar_select %p152, %s153, %s154
    %p158 = pneg %p152
    %p159 = scmp.eq.s32.totalorder %s12, 1
    %p160 = por %p158, %p159
    %p161 = scmp.ne.s32.totalorder %s153, %s156
    %p162 = scmp.eq.s32.totalorder %s12, 0
    %p163 = por %p161, %p162
    %p164 = scmp.ne.s32.totalorder %s153, %s156
    %p165 = scmp.eq.s32.totalorder %s17, 1
    %p166 = por %p164, %p165
    %p167 = scmp.ne.s32.totalorder %s156, %s157
    %p168 = scmp.eq.s32.totalorder %s17, 0
    %p169 = por %p167, %p168
    %p170 = scmp.ne.s32.totalorder %s156, %s157
    %p171 = scmp.eq.s32.totalorder %s18, 1
    %p172 = por %p170, %p171
    %p174 = scmp.ne.s32.totalorder %s157, %s173
    %p175 = scmp.eq.s32.totalorder %s18, 0
    %p176 = por %p174, %p175
    %p177 = scmp.le.s32.totalorder 1, %s12
    %p178 = scmp.lt.s32.totalorder %s12, 3
    %p179 = pnand %p177, %p178
    %p180 = pneg %p179
    // Predicated region
    $region9: #{temporal_inception.1} parent=5 // pred_check
      _
    $region10: #{temporal_inception.1} parent=5 // pred_check_branch
      %182 = sbr.rel (%p179) target = $region12
    $region11: #{temporal_inception.1} parent=5 // pred_region
      %s183 = ssub.s32 %s12, 1
      // Predicated region
      $region13: #{temporal_inception.1} parent=11 // pred_check
        %p184 = pneg %p33
      $region14: #{temporal_inception.1} parent=11 // pred_check_branch
        %186 = sbr.rel (%p184) target = $region16
      $region15: #{temporal_inception.1} parent=11 // pred_region
        _
      $region16: #{temporal_inception.1} parent=11 // pred_fallthru
        _
      // Predicated region
      $region17: #{temporal_inception.1} parent=11 // pred_check
        %p187 = pneg %p54
      $region18: #{temporal_inception.1} parent=11 // pred_check_branch
        %189 = sbr.rel (%p187) target = $region20
      $region19: #{temporal_inception.1} parent=11 // pred_region
        _
      $region20: #{temporal_inception.1} parent=11 // pred_fallthru
        _
      // Predicated region
      $region21: #{temporal_inception.1} parent=11 // pred_check
        %p190 = pneg %p75
      $region22: #{temporal_inception.1} parent=11 // pred_check_branch
        %192 = sbr.rel (%p190) target = $region24
      $region23: #{temporal_inception.1} parent=11 // pred_region
        _
      $region24: #{temporal_inception.1} parent=11 // pred_fallthru
        _
      // Predicated region
      $region25: #{temporal_inception.1} parent=11 // pred_check
        %p193 = pneg %p96
      $region26: #{temporal_inception.1} parent=11 // pred_check_branch
        %195 = sbr.rel (%p193) target = $region28
      $region27: #{temporal_inception.1} parent=11 // pred_region
        _
      $region28: #{temporal_inception.1} parent=11 // pred_fallthru
        _
      // Predicated region
      $region29: #{temporal_inception.1} parent=11 // pred_check
        %p196 = pneg %p117
      $region30: #{temporal_inception.1} parent=11 // pred_check_branch
        %198 = sbr.rel (%p196) target = $region32
      $region31: #{temporal_inception.1} parent=11 // pred_region
        _
      $region32: #{temporal_inception.1} parent=11 // pred_fallthru
        _
    $region12: #{temporal_inception.1} parent=5 // pred_fallthru
      _
    %p199 = scmp.lt.s32.totalorder %s12, 2
    // Predicated region
    $region33: #{temporal_inception.1} parent=5 // pred_check
      %p200 = pneg %p199
    $region34: #{temporal_inception.1} parent=5 // pred_check_branch
      %202 = sbr.rel (%p200) target = $region36
    $region35: #{temporal_inception.1} parent=5 // pred_region
      // Predicated region
      $region37: #{temporal_inception.1} parent=35 // pred_check
        %p203 = pneg %p137
      $region38: #{temporal_inception.1} parent=35 // pred_check_branch
        %205 = sbr.rel (%p203) target = $region40
      $region39: #{temporal_inception.1} parent=35 // pred_region
        %p206 = scmp.lt.s32.totalorder %s12, 1
        %s207 = scalar_select %p206, %s12, 1
        %s208 = smul.addr %s207, 2
        %s209 = smul.addr %s208, 4
        %s210 = scalar_lea.vmem %s5, %s209
      $region40: #{temporal_inception.1} parent=35 // pred_fallthru
        _
    $region36: #{temporal_inception.1} parent=5 // pred_fallthru
      _
    %p211 = scmp.le.s32.totalorder 1, %s12
    %p212 = scmp.lt.s32.totalorder %s12, 3
    %p213 = pnand %p211, %p212
    %p214 = pneg %p213
    // Predicated region
    $region41: #{temporal_inception.1} parent=5 // pred_check
      _
    $region42: #{temporal_inception.1} parent=5 // pred_check_branch
      %216 = sbr.rel (%p213) target = $region44
    $region43: #{temporal_inception.1} parent=5 // pred_region
      %s217 = ssub.s32 %s12, 1
      %p218 = pneg %p33
      %p219 = pneg %p30
      %p220 = pneg %p54
      %p221 = pneg %p51
      %p222 = pneg %p75
      %p223 = pneg %p72
      %p224 = pneg %p96
      %p225 = pneg %p93
      %p226 = pneg %p117
      %p227 = pneg %p114
      %p228 = scmp.lt.s32.totalorder %s17, 1
      %s229 = scalar_select %p228, %s17, 1
      %s230 = smul.addr %s229, 2
      %s231 = smul.addr %s230, 4
      %s232 = scalar_lea.vmem %s5, %s231
      %p233 = pneg %p143
      %p234 = pneg %p140
      %p235 = pneg %p169
      %p236 = pneg %p166
      %p237 = scmp.lt.s32.totalorder %s17, 1
      %s238 = scalar_select %p237, %s17, 1
      %s239 = smul.addr %s238, 8
      %s240 = smul.addr %s239, 4
      %s241 = scalar_lea.vmem %s6, %s240
      %p242 = scmp.lt.s32.totalorder %s17, 1
      %s243 = scalar_select %p242, %s17, 1
      %s244 = smul.addr %s243, 2
      %s245 = smul.addr %s244, 4
      %s246 = scalar_lea.vmem %s5, %s245
      %p247 = scmp.lt.s32.totalorder %s17, 1
      %s248 = scalar_select %p247, %s17, 1
      %s249 = smul.addr %s248, 8
      %s250 = smul.addr %s249, 4
      %s251 = scalar_lea.vmem %s6, %s250
      %v252 = vld [vmem:[%s246] sm:$0xff]
      %v253 = vld [vmem:[%s0] sm:$0x3]
      %v255 = vcombine.high %v252, %v252
      %257 = vrot.lane.b32.xlu0 %v252, 127
      %v258 = vpop.permute.xlu0 %257
      %259 = vrot.lane.b32.xlu0 %v255, 127
      %v260 = vpop.permute.xlu0 %259
      %v261 = vlaneseq
      %v262 = vand.u32 %v261, 127
      %vm263 = vcmp.lt.s32.totalorder %v262, 127
      %v264 = vsel %vm263, %v258, %v260
      %v265 = vsel %vm263, %v260, %v258
      %266 = vrot.lane.b32.xlu0 %v252, 1
      %v267 = vpop.permute.xlu0 %266
      %268 = vrot.lane.b32.xlu0 %v255, 1
      %v269 = vpop.permute.xlu0 %268
      %vm270 = vcmp.lt.s32.totalorder %v262, 1
      %v271 = vsel %vm270, %v267, %v269
      %v272 = vsel %vm270, %v269, %v267
      %273 = vrot.lane.b32.xlu0 %v252, 126
      %v274 = vpop.permute.xlu0 %273
      %275 = vrot.lane.b32.xlu0 %v255, 126
      %v276 = vpop.permute.xlu0 %275
      %vm277 = vcmp.lt.s32.totalorder %v262, 126
      %v278 = vsel %vm277, %v274, %v276
      %v279 = vsel %vm277, %v276, %v274
      %280 = vrot.lane.b32.xlu0 %v252, 2
      %v281 = vpop.permute.xlu0 %280
      %282 = vrot.lane.b32.xlu0 %v255, 2
      %v283 = vpop.permute.xlu0 %282
      %vm284 = vcmp.lt.s32.totalorder %v262, 2
      %v285 = vsel %vm284, %v281, %v283
      %v286 = vsel %vm284, %v283, %v281
      %287 = vrot.lane.b32.xlu0 %v252, 125
      %v288 = vpop.permute.xlu0 %287
      %289 = vrot.lane.b32.xlu0 %v255, 125
      %v290 = vpop.permute.xlu0 %289
      %vm291 = vcmp.lt.s32.totalorder %v262, 125
      %v292 = vsel %vm291, %v288, %v290
      %v293 = vsel %vm291, %v290, %v288
      %294 = vrot.lane.b32.xlu0 %v252, 3
      %v295 = vpop.permute.xlu0 %294
      %296 = vrot.lane.b32.xlu0 %v255, 3
      %v297 = vpop.permute.xlu0 %296
      %vm298 = vcmp.lt.s32.totalorder %v262, 3
      %v299 = vsel %vm298, %v295, %v297
      %v300 = vsel %vm298, %v297, %v295
      %vm301 = vcmp.lt.s32.totalorder %v253, 3
      %v302 = vsel %vm301, 1, 0
      %v303 = vlaneseq
      %v304 = vshrl.u32 %v303, 7
      %v305 = vsub.s32 0, %v304
      %v306 = vrot.slane %v302, %v305
      %v307 = vlaneseq
      %v308 = vshrl.u32 %v307, 7
      %v309 = vsub.s32 1, %v308
      %v310 = vrot.slane %v302, %v309
      %vm311 = vcmp.eq.s32.totalorder %v306, 1
      %vm312 = vcmp.eq.s32.totalorder %v310, 1
      %v313 = vsel %vm311, 0.0, %v300
      %v314 = vsel %vm312, 0.0, %v299
      %vm315 = vcmp.lt.s32.totalorder %v253, 2
      %v316 = vsel %vm315, 1, 0
      %v317 = vlaneseq
      %v318 = vshrl.u32 %v317, 7
      %v319 = vsub.s32 0, %v318
      %v320 = vrot.slane %v316, %v319
      %v321 = vlaneseq
      %v322 = vshrl.u32 %v321, 7
      %v323 = vsub.s32 1, %v322
      %v324 = vrot.slane %v316, %v323
      %vm325 = vcmp.eq.s32.totalorder %v320, 1
      %vm326 = vcmp.eq.s32.totalorder %v324, 1
      %v327 = vsel %vm325, 0.0, %v286
      %v328 = vsel %vm326, 0.0, %v285
      %vm329 = vcmp.lt.s32.totalorder %v253, 1
      %v330 = vsel %vm329, 1, 0
      %v331 = vlaneseq
      %v332 = vshrl.u32 %v331, 7
      %v333 = vsub.s32 0, %v332
      %v334 = vrot.slane %v330, %v333
      %v335 = vlaneseq
      %v336 = vshrl.u32 %v335, 7
      %v337 = vsub.s32 1, %v336
      %v338 = vrot.slane %v330, %v337
      %vm339 = vcmp.eq.s32.totalorder %v334, 1
      %vm340 = vcmp.eq.s32.totalorder %v338, 1
      %v341 = vsel %vm339, 0.0, %v272
      %v342 = vsel %vm340, 0.0, %v271
      %vm343 = vcmp.ge.s32.totalorder %v253, 15
      %v344 = vsel %vm343, 1, 0
      %v345 = vlaneseq
      %v346 = vshrl.u32 %v345, 7
      %v347 = vsub.s32 0, %v346
      %v348 = vrot.slane %v344, %v347
      %v349 = vlaneseq
      %v350 = vshrl.u32 %v349, 7
      %v351 = vsub.s32 1, %v350
      %v352 = vrot.slane %v344, %v351
      %vm353 = vcmp.eq.s32.totalorder %v348, 1
      %vm354 = vcmp.eq.s32.totalorder %v352, 1
      %v355 = vsel %vm353, 0.0, %v264
      %v356 = vsel %vm354, 0.0, %v265
      %vm357 = vcmp.ge.s32.totalorder %v253, 14
      %v358 = vsel %vm357, 1, 0
      %v359 = vlaneseq
      %v360 = vshrl.u32 %v359, 7
      %v361 = vsub.s32 0, %v360
      %v362 = vrot.slane %v358, %v361
      %v363 = vlaneseq
      %v364 = vshrl.u32 %v363, 7
      %v365 = vsub.s32 1, %v364
      %v366 = vrot.slane %v358, %v365
      %vm367 = vcmp.eq.s32.totalorder %v362, 1
      %vm368 = vcmp.eq.s32.totalorder %v366, 1
      %v369 = vsel %vm367, 0.0, %v278
      %v370 = vsel %vm368, 0.0, %v279
      %vm371 = vcmp.ge.s32.totalorder %v253, 13
      %v372 = vsel %vm371, 1, 0
      %v373 = vlaneseq
      %v374 = vshrl.u32 %v373, 7
      %v375 = vsub.s32 0, %v374
      %v376 = vrot.slane %v372, %v375
      %v377 = vlaneseq
      %v378 = vshrl.u32 %v377, 7
      %v379 = vsub.s32 1, %v378
      %v380 = vrot.slane %v372, %v379
      %vm381 = vcmp.eq.s32.totalorder %v376, 1
      %vm382 = vcmp.eq.s32.totalorder %v380, 1
      %v383 = vsel %vm381, 0.0, %v292
      %v384 = vsel %vm382, 0.0, %v293
      %v385 = vld [vmem:[%s1] sm:$0xf]
      %387 = vset.pattern.permute.xlu0 1
      %388 = vperm.xlu0 %387, %v385
      %v389 = vpop.permute.xlu0 %388
      %v391 = vmul.f32 %v389, %v252
      %v392 = vmul.f32 %v389, %v255
      %393 = vset.pattern.permute.xlu0 0
      %394 = vperm.xlu0 %393, %v385
      %v395 = vpop.permute.xlu0 %394
      %v397 = vmul.f32 %v395, %v341
      %v398 = vmul.f32 %v395, %v342
      %v399 = vadd.f32 %v391, %v397
      %v400 = vadd.f32 %v392, %v398
      %401 = vset.pattern.permute.xlu0 2
      %402 = vperm.xlu0 %401, %v385
      %v403 = vpop.permute.xlu0 %402
      %v405 = vmul.f32 %v403, %v355
      %v406 = vmul.f32 %v403, %v356
      %v407 = vadd.f32 %v399, %v405
      %v408 = vadd.f32 %v400, %v406
      %v411 = vcombine.low %v407, %v408
      %413 = vst [vmem:[%s251] sm:$0xff] %v411
      %v414 = vld [vmem:[%s2] sm:$0xf]
      %416 = vset.pattern.permute.xlu0 2
      %417 = vperm.xlu0 %416, %v414
      %v418 = vpop.permute.xlu0 %417
      %v420 = vmul.f32 %v418, %v252
      %v421 = vmul.f32 %v418, %v255
      %422 = vset.pattern.permute.xlu0 0
      %423 = vperm.xlu0 %422, %v414
      %v424 = vpop.permute.xlu0 %423
      %v426 = vmul.f32 %v424, %v327
      %v427 = vmul.f32 %v424, %v328
      %v428 = vadd.f32 %v420, %v426
      %v429 = vadd.f32 %v421, %v427
      %430 = vset.pattern.permute.xlu0 1
      %431 = vperm.xlu0 %430, %v414
      %v432 = vpop.permute.xlu0 %431
      %v434 = vmul.f32 %v432, %v341
      %v435 = vmul.f32 %v432, %v342
      %v436 = vadd.f32 %v428, %v434
      %v437 = vadd.f32 %v429, %v435
      %438 = vset.pattern.permute.xlu0 3
      %439 = vperm.xlu0 %438, %v414
      %v440 = vpop.permute.xlu0 %439
      %v442 = vmul.f32 %v440, %v355
      %v443 = vmul.f32 %v440, %v356
      %v444 = vadd.f32 %v436, %v442
      %v445 = vadd.f32 %v437, %v443
      %446 = vset.pattern.permute.xlu0 4
      %447 = vperm.xlu0 %446, %v414
      %v448 = vpop.permute.xlu0 %447
      %v450 = vmul.f32 %v448, %v369
      %v451 = vmul.f32 %v448, %v370
      %v452 = vadd.f32 %v444, %v450
      %v453 = vadd.f32 %v445, %v451
      %v456 = vcombine.low %v452, %v453
      %s458 = scalar_lea.vmem %s251, 8
      %459 = vst [vmem:[%s458] sm:$0xff] %v456
      %v460 = vld [vmem:[%s3] sm:$0xf]
      %462 = vset.pattern.permute.xlu0 3
      %463 = vperm.xlu0 %462, %v460
      %v464 = vpop.permute.xlu0 %463
      %v466 = vmul.f32 %v464, %v252
      %v467 = vmul.f32 %v464, %v255
      %468 = vset.pattern.permute.xlu0 0
      %469 = vperm.xlu0 %468, %v460
      %v470 = vpop.permute.xlu0 %469
      %v472 = vmul.f32 %v470, %v313
      %v473 = vmul.f32 %v470, %v314
      %v474 = vadd.f32 %v466, %v472
      %v475 = vadd.f32 %v467, %v473
      %476 = vset.pattern.permute.xlu0 1
      %477 = vperm.xlu0 %476, %v460
      %v478 = vpop.permute.xlu0 %477
      %v480 = vmul.f32 %v478, %v327
      %v481 = vmul.f32 %v478, %v328
      %v482 = vadd.f32 %v474, %v480
      %v483 = vadd.f32 %v475, %v481
      %484 = vset.pattern.permute.xlu0 2
      %485 = vperm.xlu0 %484, %v460
      %v486 = vpop.permute.xlu0 %485
      %v488 = vmul.f32 %v486, %v341
      %v489 = vmul.f32 %v486, %v342
      %v490 = vadd.f32 %v482, %v488
      %v491 = vadd.f32 %v483, %v489
      %492 = vset.pattern.permute.xlu0 4
      %493 = vperm.xlu0 %492, %v460
      %v494 = vpop.permute.xlu0 %493
      %v496 = vmul.f32 %v494, %v355
      %v497 = vmul.f32 %v494, %v356
      %v498 = vadd.f32 %v490, %v496
      %v499 = vadd.f32 %v491, %v497
      %500 = vset.pattern.permute.xlu0 5
      %501 = vperm.xlu0 %500, %v460
      %v502 = vpop.permute.xlu0 %501
      %v504 = vmul.f32 %v502, %v369
      %v505 = vmul.f32 %v502, %v370
      %v506 = vadd.f32 %v498, %v504
      %v507 = vadd.f32 %v499, %v505
      %508 = vset.pattern.permute.xlu0 6
      %509 = vperm.xlu0 %508, %v460
      %v510 = vpop.permute.xlu0 %509
      %v512 = vmul.f32 %v510, %v383
      %v513 = vmul.f32 %v510, %v384
      %v514 = vadd.f32 %v506, %v512
      %v515 = vadd.f32 %v507, %v513
      %v518 = vcombine.low %v514, %v515
      %s520 = scalar_lea.vmem %s251, 16
      %521 = vst [vmem:[%s520] sm:$0xff] %v518
      %v522 = vsel %vm339, -inf, %v272
      %v523 = vsel %vm340, -inf, %v271
      %v524 = vmax.f32 %v522, %v252
      %v525 = vmax.f32 %v523, %v255
      %v526 = vsel %vm353, -inf, %v264
      %v527 = vsel %vm354, -inf, %v265
      %v528 = vmax.f32 %v524, %v526
      %v529 = vmax.f32 %v525, %v527
      %v530 = vld [vmem:[%s4] sm:$0xf]
      %532 = vset.pattern.permute.xlu0 0
      %533 = vperm.xlu0 %532, %v530
      %v534 = vpop.permute.xlu0 %533
      %v536 = vmul.f32 %v534, %v528
      %v537 = vmul.f32 %v534, %v529
      %v540 = vcombine.low %v536, %v537
      %s542 = scalar_lea.vmem %s251, 24
      %543 = vst [vmem:[%s542] sm:$0xff] %v540
      %p544 = scmp.lt.s32.totalorder %s17, 1
      %s545 = scalar_select %p544, %s17, 1
      %s546 = smul.addr %s545, 8
      %s547 = smul.addr %s546, 4
      %s548 = scalar_lea.vmem %s6, %s547
      // Predicated region
      $region45: #{temporal_inception.1} parent=43 // pred_check
        %p549 = pneg %p166
      $region46: #{temporal_inception.1} parent=43 // pred_check_branch
        %551 = sbr.rel (%p549) target = $region48
      $region47: #{temporal_inception.1} parent=43 // pred_region
        _
      $region48: #{temporal_inception.1} parent=43 // pred_fallthru
        _
    $region44: #{temporal_inception.1} parent=5 // pred_fallthru
      _
    %p552 = scmp.le.s32.totalorder 2, %s12
    // Predicated region
    $region49: #{temporal_inception.1} parent=5 // pred_check
      %p553 = pneg %p552
    $region50: #{temporal_inception.1} parent=5 // pred_check_branch
      %555 = sbr.rel (%p553) target = $region52
    $region51: #{temporal_inception.1} parent=5 // pred_region
      %s556 = ssub.s32 %s12, 2
      // Predicated region
      $region53: #{temporal_inception.1} parent=51 // pred_check
        %p557 = pneg %p172
      $region54: #{temporal_inception.1} parent=51 // pred_check_branch
        %559 = sbr.rel (%p557) target = $region56
      $region55: #{temporal_inception.1} parent=51 // pred_region
        %p560 = scmp.lt.s32.totalorder %s18, 1
        %s561 = scalar_select %p560, %s18, 1
        %s562 = smul.addr %s561, 8
        %s563 = smul.addr %s562, 4
        %s564 = scalar_lea.vmem %s6, %s563
      $region56: #{temporal_inception.1} parent=51 // pred_fallthru
        _
    $region52: #{temporal_inception.1} parent=5 // pred_fallthru
      _
  $region6: #{temporal_inception.1} parent=0 // loop_footer
    %s16 = sadd.s32 1, %s12
  $region7: #{temporal_inception.1} parent=0 // loop_footer_branch
    %11 = sbr.rel target = $region3
  $region8: #{temporal_inception.1} parent=0 // loop_exit
    _

</llo_original>
